<compile_context>
chip_gen: v6e
topology: v6e:2x2x1
jax: 0.10.0
libtpu: 0.0.40
codegen_flags: <defaults>
</compile_context>

<pallas_src>
import functools

import jax
import jax.numpy as jnp
from jax.experimental import pallas as pl
from jax.experimental.pallas import tpu as pltpu


def _round_up(x, m):
    return ((x + m - 1) // m) * m


def _qnet_kernel(x_ref, w_ref, b_ref, o_ref, *, s_pad, width):
    """relu(x@W1+b1) -> relu(.@W2+b2) -> .@W3+b3 ; bf16 matmuls, f32 accum.

    x_ref: (TB, s_pad) f32               batch tile of states (zero-padded lanes)
    w_ref: (s_pad + 2*width, width) bf16 packed [W1; W2; W3], zero-padded
    b_ref: (8, width) f32                rows 0..2 = b1, b2, b3 (zero-padded)
    o_ref: (TB, width) bf16              lane-dense output (first A lanes valid)
    """
    x = x_ref[...].astype(jnp.bfloat16)

    # Static, tile-aligned slices of the packed weight slab (no copies).
    w1 = w_ref[0:s_pad, :]
    w2 = w_ref[s_pad:s_pad + width, :]
    w3 = w_ref[s_pad + width:s_pad + 2 * width, :]

    h = jnp.dot(x, w1, preferred_element_type=jnp.float32) + b_ref[0:1, :]
    h = jnp.maximum(h, 0.0).astype(jnp.bfloat16)

    h = jnp.dot(h, w2, preferred_element_type=jnp.float32) + b_ref[1:2, :]
    h = jnp.maximum(h, 0.0).astype(jnp.bfloat16)

    out = jnp.dot(h, w3, preferred_element_type=jnp.float32) + b_ref[2:3, :]
    o_ref[...] = out.astype(o_ref.dtype)


def pack_params(params):
    """Pack per-layer f32 params into one bf16 weight slab + one f32 bias slab."""
    w1, b1 = params["w1"], params["b1"]   # [S, F1], [1, F1]
    w2, b2 = params["w2"], params["b2"]   # [F1, F2], [1, F2]
    w3, b3 = params["w3"], params["b3"]   # [F2, A], [1, A]

    S, F1 = w1.shape
    F2 = w2.shape[1]
    A = w3.shape[1]

    width = _round_up(max(F1, F2, A, 128), 128)   # lane-dense common width
    s_pad = _round_up(max(S, 16), 16)             # bf16 sublane tile alignment

    def pad2(w, rows, cols):
        return jnp.pad(w, ((0, rows - w.shape[0]), (0, cols - w.shape[1])))

    w_slab = jnp.concatenate(
        [pad2(w1, s_pad, width),
         pad2(w2, width, width),
         pad2(w3, width, width)], axis=0).astype(jnp.bfloat16)

    b_slab = jnp.concatenate(
        [pad2(b1, 1, width),
         pad2(b2, 1, width),
         pad2(b3, 1, width),
         jnp.zeros((5, width), jnp.float32)], axis=0).astype(jnp.float32)

    return {"w_slab": w_slab, "b_slab": b_slab,
            "s_pad": s_pad, "width": width,
            "state_size": S, "action_size": A,
            "fc1": F1, "fc2": F2}


def _batch_tiling(B, tb):
    """Choose (n_tiles, tile_rows, padded_batch)."""
    n_tiles = max(1, -(-B // tb))
    # v7x has 2 TensorCores: make sure the "parallel" grid axis has >= 2 steps
    # once the batch is big enough to be worth splitting.
    if n_tiles == 1 and B >= 256:
        n_tiles = 2
    tb_eff = _round_up(-(-B // n_tiles), 16)   # 16-row align (bf16 output tiles)
    return n_tiles, tb_eff, n_tiles * tb_eff


@functools.partial(
    jax.jit,
    static_argnames=("s_pad", "width", "action_size", "fc1", "fc2", "tb"))
def _qnet_forward(state, w_slab, b_slab, *, s_pad, width, action_size,
                  fc1, fc2, tb):
    B, S = state.shape
    R = w_slab.shape[0]
    n_tiles, tb_eff, b_pad = _batch_tiling(B, tb)

    x = state
    if (b_pad, s_pad) != (B, S):
        x = jnp.pad(state, ((0, b_pad - B), (0, s_pad - S)))

    kernel = functools.partial(_qnet_kernel, s_pad=s_pad, width=width)

    flops = 2 * B * (S * fc1 + fc1 * fc2 + fc2 * action_size)
    bytes_accessed = (x.size * 4 + w_slab.size * 2 + b_slab.size * 4
                      + b_pad * width * 2)          # bf16 output stream

    # VMEM working-set estimate: double-buffered x/out tiles, weight/bias
    # buffers, plus in-kernel activation temporaries. Only raise the scoped
    # limit when the default would be tight (very large tb).
    vmem_est = (2 * (tb_eff * s_pad * 4 + tb_eff * width * 2)
                + 2 * (R * width * 2 + 8 * width * 4)
                + 8 * tb_eff * width)
    cp_kwargs = {"dimension_semantics": ("parallel",)}
    if vmem_est > 12 * 1024 * 1024:
        cp_kwargs["vmem_limit_bytes"] = int(min(48 * 1024 * 1024, 2 * vmem_est))

    out = pl.pallas_call(
        kernel,
        out_shape=jax.ShapeDtypeStruct((b_pad, width), jnp.bfloat16),
        grid=(n_tiles,),
        in_specs=[
            pl.BlockSpec((tb_eff, s_pad), lambda i: (i, 0)),   # state tile
            pl.BlockSpec((R, width), lambda i: (0, 0)),        # weights resident
            pl.BlockSpec((8, width), lambda i: (0, 0)),        # biases resident
        ],
        out_specs=pl.BlockSpec((tb_eff, width), lambda i: (i, 0)),
        compiler_params=pltpu.CompilerParams(**cp_kwargs),
        cost_estimate=pl.CostEstimate(
            flops=int(flops), transcendentals=0,
            bytes_accessed=int(bytes_accessed)),
    )(x, w_slab, b_slab)

    # Slice + cast happen inside this jit -> fused with the surrounding
    # program instead of a standalone dispatch / extra HBM round trip.
    return out[:B, :action_size].astype(jnp.float32)


def qnetwork_forward(state, packed, *, tb=1024):
    """state: [B, state_size] f32 -> action values [B, action_size] f32."""
    return _qnet_forward(state, packed["w_slab"], packed["b_slab"],
                         s_pad=packed["s_pad"], width=packed["width"],
                         action_size=packed["action_size"],
                         fc1=packed["fc1"], fc2=packed["fc2"], tb=tb)


def init_params(key, state_size, action_size, fc1_units=64, fc2_units=64):
    """Deterministic init mimicking nn.Linear default (uniform +/- 1/sqrt(fan_in))."""
    ks = jax.random.split(key, 6)

    def linear(kw, kb, fan_in, fan_out):
        bound = 1.0 / jnp.sqrt(fan_in)
        w = jax.random.uniform(kw, (fan_in, fan_out), jnp.float32, -bound, bound)
        b = jax.random.uniform(kb, (1, fan_out), jnp.float32, -bound, bound)
        return w, b

    w1, b1 = linear(ks[0], ks[1], state_size, fc1_units)
    w2, b2 = linear(ks[2], ks[3], fc1_units, fc2_units)
    w3, b3 = linear(ks[4], ks[5], fc2_units, action_size)
    return dict(w1=w1, b1=b1, w2=w2, b2=b2, w3=w3, b3=b3)


def _reference_f32(state, params):
    h = jnp.maximum(state @ params["w1"] + params["b1"], 0.0)
    h = jnp.maximum(h @ params["w2"] + params["b2"], 0.0)
    return h @ params["w3"] + params["b3"]


if __name__ == "__main__":
    key = jax.random.PRNGKey(0)
    k_state, k_params, k_big = jax.random.split(key, 3)

    batch = 8
    state_size = 8       # state_shape = (8,)
    action_size = 4
    fc1_units = 64
    fc2_units = 64

    state = jax.random.normal(k_state, (batch, state_size), jnp.float32)
    params = init_params(k_params, state_size, action_size, fc1_units, fc2_units)
    packed = pack_params(params)

    out = qnetwork_forward(state, packed)
    jax.block_until_ready(out)
    assert out.shape == (batch, action_size)
    assert out.dtype == jnp.float32

    # Precision-matched reference (bf16 weights/activations, f32 accumulation,
    # bf16 output rounding to mirror the kernel's bf16 writeback).
    w1b = params["w1"].astype(jnp.bfloat16)
    w2b = params["w2"].astype(jnp.bfloat16)
    w3b = params["w3"].astype(jnp.bfloat16)
    h = jnp.dot(state.astype(jnp.bfloat16), w1b,
                preferred_element_type=jnp.float32) + params["b1"]
    h = jnp.maximum(h, 0.0)
    h = jnp.dot(h.astype(jnp.bfloat16), w2b,
                preferred_element_type=jnp.float32) + params["b2"]
    h = jnp.maximum(h, 0.0)
    ref_bf16 = jnp.dot(h.astype(jnp.bfloat16), w3b,
                       preferred_element_type=jnp.float32) + params["b3"]
    ref_bf16 = ref_bf16.astype(jnp.bfloat16).astype(jnp.float32)
    assert jnp.allclose(out, ref_bf16, atol=2e-3, rtol=2e-3)

    # Sanity against the pure-f32 PyTorch-semantics reference (loose, bf16 rounding).
    ref_f32 = _reference_f32(state, params)
    assert jnp.allclose(out, ref_f32, atol=5e-2, rtol=5e-2)

    # Exercise the multi-tile (>=2 grid steps, both v7x TensorCores) path.
    big_batch = 384
    big_state = jax.random.normal(k_big, (big_batch, state_size), jnp.float32)
    big_out = qnetwork_forward(big_state, packed)
    jax.block_until_ready(big_out)
    assert big_out.shape == (big_batch, action_size)
    assert jnp.allclose(big_out, _reference_f32(big_state, params),
                        atol=5e-2, rtol=5e-2)

    print("KERNEL_OK")
</pallas_src>

<mosaic_0001>
module attributes {stable_mosaic.version = 11 : i64} {
  func.func @_qnet_kernel(%arg0: i32, %arg1: memref<16x16xf32, #tpu.memory_space<vmem>>, %arg2: memref<272x128xbf16, #tpu.memory_space<vmem>>, %arg3: memref<8x128xf32, #tpu.memory_space<vmem>>, %arg4: memref<16x128xbf16, #tpu.memory_space<vmem>>) attributes {dimension_semantics = [#tpu.dimension_semantics<parallel>], iteration_bounds = array<i64: 1>, scalar_prefetch = 0 : i64, scratch_operands = 0 : i64, tpu.core_type = #tpu.core_type<tc>, window_params = [{transform_indices = @transform_0, window_bounds = array<i64: 16, 16>}, {pipeline_mode = #tpu.pipeline_mode<synchronous>, transform_indices = @transform_1, window_bounds = array<i64: 272, 128>}, {pipeline_mode = #tpu.pipeline_mode<synchronous>, transform_indices = @transform_2, window_bounds = array<i64: 8, 128>}, {transform_indices = @transform_3, window_bounds = array<i64: 16, 128>}]} {
    %c0 = arith.constant 0 : index
    %c0_0 = arith.constant 0 : index
    %0 = vector.load %arg1[%c0, %c0_0] : memref<16x16xf32, #tpu.memory_space<vmem>>, vector<16x16xf32>
    %1 = arith.truncf %0 : vector<16x16xf32> to vector<16x16xbf16>
    %c0_1 = arith.constant 0 : index
    %c0_2 = arith.constant 0 : index
    %2 = vector.load %arg2[%c0_1, %c0_2] : memref<272x128xbf16, #tpu.memory_space<vmem>>, vector<16x128xbf16>
    %c16 = arith.constant 16 : index
    %c0_3 = arith.constant 0 : index
    %3 = vector.load %arg2[%c16, %c0_3] : memref<272x128xbf16, #tpu.memory_space<vmem>>, vector<128x128xbf16>
    %c144 = arith.constant 144 : index
    %c0_4 = arith.constant 0 : index
    %4 = vector.load %arg2[%c144, %c0_4] : memref<272x128xbf16, #tpu.memory_space<vmem>>, vector<128x128xbf16>
    %cst = arith.constant dense<0.000000e+00> : vector<16x128xf32>
    %5 = tpu.matmul %1, %2, %cst {dimension_numbers = #tpu.dot_dimension_numbers<[1], [0], [0], [1], [0, 0, 1, 1], [], []>} : vector<16x16xbf16>, vector<16x128xbf16>, vector<16x128xf32> -> vector<16x128xf32>
    %c0_5 = arith.constant 0 : index
    %c0_6 = arith.constant 0 : index
    %6 = vector.load %arg3[%c0_5, %c0_6] : memref<8x128xf32, #tpu.memory_space<vmem>>, vector<1x128xf32>
    %7 = vector.broadcast %6 : vector<1x128xf32> to vector<16x128xf32>
    %8 = arith.addf %5, %7 : vector<16x128xf32>
    %cst_7 = arith.constant 0.000000e+00 : f32
    %9 = vector.broadcast %cst_7 : f32 to vector<16x128xf32>
    %10 = arith.maximumf %8, %9 : vector<16x128xf32>
    %11 = arith.truncf %10 : vector<16x128xf32> to vector<16x128xbf16>
    %cst_8 = arith.constant dense<0.000000e+00> : vector<16x128xf32>
    %12 = tpu.matmul %11, %3, %cst_8 {dimension_numbers = #tpu.dot_dimension_numbers<[1], [0], [0], [1], [0, 0, 1, 1], [], []>} : vector<16x128xbf16>, vector<128x128xbf16>, vector<16x128xf32> -> vector<16x128xf32>
    %c1 = arith.constant 1 : index
    %c0_9 = arith.constant 0 : index
    %13 = vector.load %arg3[%c1, %c0_9] : memref<8x128xf32, #tpu.memory_space<vmem>>, vector<1x128xf32>
    %14 = vector.broadcast %13 : vector<1x128xf32> to vector<16x128xf32>
    %15 = arith.addf %12, %14 : vector<16x128xf32>
    %cst_10 = arith.constant 0.000000e+00 : f32
    %16 = vector.broadcast %cst_10 : f32 to vector<16x128xf32>
    %17 = arith.maximumf %15, %16 : vector<16x128xf32>
    %18 = arith.truncf %17 : vector<16x128xf32> to vector<16x128xbf16>
    %cst_11 = arith.constant dense<0.000000e+00> : vector<16x128xf32>
    %19 = tpu.matmul %18, %4, %cst_11 {dimension_numbers = #tpu.dot_dimension_numbers<[1], [0], [0], [1], [0, 0, 1, 1], [], []>} : vector<16x128xbf16>, vector<128x128xbf16>, vector<16x128xf32> -> vector<16x128xf32>
    %c2 = arith.constant 2 : index
    %c0_12 = arith.constant 0 : index
    %20 = vector.load %arg3[%c2, %c0_12] : memref<8x128xf32, #tpu.memory_space<vmem>>, vector<1x128xf32>
    %21 = vector.broadcast %20 : vector<1x128xf32> to vector<16x128xf32>
    %22 = arith.addf %19, %21 : vector<16x128xf32>
    %23 = arith.truncf %22 : vector<16x128xf32> to vector<16x128xbf16>
    %c0_13 = arith.constant 0 : index
    %c0_14 = arith.constant 0 : index
    %24 = vector.load %arg4[%c0_13, %c0_14] : memref<16x128xbf16, #tpu.memory_space<vmem>>, vector<16x128xbf16>
    tpu.vector_store %arg4[%c0_13, %c0_14], %23 {strides = array<i32>} : memref<16x128xbf16, #tpu.memory_space<vmem>>, vector<16x128xbf16>,
    return
  }
  func.func @transform_0(%arg0: i32) -> (i32, i32) {
    %c0_i32 = arith.constant 0 : i32
    %c0_i32_0 = arith.constant 0 : i32
    return %arg0, %c0_i32 : i32, i32
  }
  func.func @transform_1(%arg0: i32) -> (i32, i32) {
    %c0_i32 = arith.constant 0 : i32
    %c0_i32_0 = arith.constant 0 : i32
    %c0_i32_1 = arith.constant 0 : i32
    return %c0_i32, %c0_i32_0 : i32, i32
  }
  func.func @transform_2(%arg0: i32) -> (i32, i32) {
    %c0_i32 = arith.constant 0 : i32
    %c0_i32_0 = arith.constant 0 : i32
    %c0_i32_1 = arith.constant 0 : i32
    return %c0_i32, %c0_i32_0 : i32, i32
  }
  func.func @transform_3(%arg0: i32) -> (i32, i32) {
    %c0_i32 = arith.constant 0 : i32
    %c0_i32_0 = arith.constant 0 : i32
    return %arg0, %c0_i32 : i32, i32
  }
}

</mosaic_0001>

<llo_original>
// kernel: _qnet_forward.1
$region0: #{_qnet_forward.1}
  #allocation0 [shape = 'u32[]', space=smem, size = 0x4, offset = 0x4, fixed_abs, tag = 'smem constant byte address 0x4 - core index']
  #allocation1 [shape = 'u32[144,128]{1,0:T(1,128)}', space=vmem, size = 0x12000, scoped, tag = 'internal scratch']
  %s0 = inlined_call_operand.vmem [shape: f32[16,16], index: 0, kind: input, shape index: {}]
  %s1 = inlined_call_operand.hbm [shape: bf16[272,128], index: 1, kind: input, shape index: {}]
  %s2 = inlined_call_operand.vmem [shape: f32[8,128], index: 2, kind: input, shape index: {}]
  %s3 = inlined_call_operand.vmem [shape: bf16[16,128], index: 3, kind: output, shape index: {}]
  %s4 = sld [smem:[#allocation0]]
  $region26: #{_qnet_forward.1} parent=0
    _
  %s6 = ssub.s32 1, %s4
  %s7 = scalar_select 0, %s6, %s4
  $region1: #{_qnet_forward.1} parent=0
    #allocation2 [shape = 'u8[69632]{0}', space=vmem, size = 0x11000, scoped, tag = 'input window, operand 1, single buffered']
    #allocation3 [shape = 's32[1]{0}', space=sflag, size = 0x4, scoped, tag = 'scoped memory for _qnet_forward.1']
    %8 = vsyncpa [#allocation3], 0
    // Predicated region
    $region2: #{_qnet_forward.1} parent=1 // pred_check
      _
    $region3: #{_qnet_forward.1} parent=1 // pred_check_branch
      %10 = sbr.rel (0) target = $region5
    $region4: #{_qnet_forward.1} parent=1 // pred_region
      _
    $region5: #{_qnet_forward.1} parent=1 // pred_fallthru
      _
    // Predicated region
    $region6: #{_qnet_forward.1} parent=1 // pred_check
      _
    $region7: #{_qnet_forward.1} parent=1 // pred_check_branch
      %12 = sbr.rel (0) target = $region9
    $region8: #{_qnet_forward.1} parent=1 // pred_region
      %s14 = ssub.s32 2176, 2176
      %15 = vsyncadd [#allocation3], %s14
      %s16 = sshll.u32 [#allocation2], 4
      %s17 = int_to_ptr.vmem [resolvable:$true] %s16
      %22 = dma.hbm_to_vmem [thread:$0]  %s1, 2176, %s17, [#allocation3], 64, 64, 4
    $region9: #{_qnet_forward.1} parent=1 // pred_fallthru
      _
    // Predicated region
    $region10: #{_qnet_forward.1} parent=1 // pred_check
      _
    $region11: #{_qnet_forward.1} parent=1 // pred_check_branch
      %24 = sbr.rel (0) target = $region13
    $region12: #{_qnet_forward.1} parent=1 // pred_region
      _
    $region13: #{_qnet_forward.1} parent=1 // pred_fallthru
      _
    // Predicated region
    $region14: #{_qnet_forward.1} parent=1 // pred_check
      _
    $region15: #{_qnet_forward.1} parent=1 // pred_check_branch
      %26 = sbr.rel (0) target = $region17
    $region16: #{_qnet_forward.1} parent=1 // pred_region
      %27 = dma.done [#allocation3], 2176
    $region17: #{_qnet_forward.1} parent=1 // pred_fallthru
      _
    %v29 = vld [vmem:[%s0] sm:$0xff]
    %v30 = vld [vmem:[%s0 + $0x8] sm:$0xff]
    %v31 = vpack.c.bf16 %v30, %v29
    %v32 = vld [vmem:[#allocation2] sm:$0xf]
    %v33 = vld [vmem:[#allocation2 + $0x4] sm:$0xf]
    %v34 = vld [vmem:[#allocation2 + $0x8] sm:$0xf]
    %v35 = vld [vmem:[#allocation2 + $0xc] sm:$0xf]
    %v36 = vld [vmem:[#allocation2 + $0x10] sm:$0xf]
    %v37 = vld [vmem:[#allocation2 + $0x14] sm:$0xf]
    %v38 = vld [vmem:[#allocation2 + $0x18] sm:$0xf]
    %v39 = vld [vmem:[#allocation2 + $0x1c] sm:$0xf]
    %v40 = vld [vmem:[#allocation2 + $0x20] sm:$0xf]
    %v41 = vld [vmem:[#allocation2 + $0x24] sm:$0xf]
    %v42 = vld [vmem:[#allocation2 + $0x28] sm:$0xf]
    %v43 = vld [vmem:[#allocation2 + $0x2c] sm:$0xf]
    %v44 = vld [vmem:[#allocation2 + $0x30] sm:$0xf]
    %v45 = vld [vmem:[#allocation2 + $0x34] sm:$0xf]
    %v46 = vld [vmem:[#allocation2 + $0x38] sm:$0xf]
    %v47 = vld [vmem:[#allocation2 + $0x3c] sm:$0xf]
    %v48 = vld [vmem:[#allocation2 + $0x40] sm:$0xf]
    %v49 = vld [vmem:[#allocation2 + $0x44] sm:$0xf]
    %v50 = vld [vmem:[#allocation2 + $0x48] sm:$0xf]
    %v51 = vld [vmem:[#allocation2 + $0x4c] sm:$0xf]
    %v52 = vld [vmem:[#allocation2 + $0x50] sm:$0xf]
    %v53 = vld [vmem:[#allocation2 + $0x54] sm:$0xf]
    %v54 = vld [vmem:[#allocation2 + $0x58] sm:$0xf]
    %v55 = vld [vmem:[#allocation2 + $0x5c] sm:$0xf]
    %v56 = vld [vmem:[#allocation2 + $0x60] sm:$0xf]
    %v57 = vld [vmem:[#allocation2 + $0x64] sm:$0xf]
    %v58 = vld [vmem:[#allocation2 + $0x68] sm:$0xf]
    %v59 = vld [vmem:[#allocation2 + $0x6c] sm:$0xf]
    %v60 = vld [vmem:[#allocation2 + $0x70] sm:$0xf]
    %v61 = vld [vmem:[#allocation2 + $0x74] sm:$0xf]
    %v62 = vld [vmem:[#allocation2 + $0x78] sm:$0xf]
    %v63 = vld [vmem:[#allocation2 + $0x7c] sm:$0xf]
    %v64 = vld [vmem:[#allocation2 + $0x80] sm:$0xf]
    %v65 = vld [vmem:[#allocation2 + $0x84] sm:$0xf]
    %v66 = vld [vmem:[%s2] sm:$0x1]
    %v67 = vlaneseq
    %v68 = vshrl.u32 %v67, 7
    %v69 = vsub.s32 0, %v68
    %v70 = vrot.slane %v66, %v69
    %v73 = vunpack.c.l.b16 %v32
    %v74 = vunpack.c.l.b16 %v33
    %v75 = vpack.c.b16 %v74, %v73
    %vm77 = vcmask 130048
    %v79 = vsel %vm77, %v31, 0
    %81 = vmatprep.subr.bf16.mxu0 0
    %82 = vmatpush1.bf16.msra.mxu0 0
    %83 = vmatprep.subr.bf16.mxu0 0
    %84 = vmatpush1.bf16.msra.mxu0 0
    %85 = vmatprep.subr.bf16.mxu0 0
    %86 = vmatpush1.bf16.msra.mxu0 0
    %87 = vmatprep.subr.bf16.mxu0 0
    %88 = vmatpush1.bf16.msra.mxu0 0
    %89 = vmatprep.subr.bf16.mxu0 0
    %90 = vmatpush1.bf16.msra.mxu0 0
    %91 = vmatprep.subr.bf16.mxu0 0
    %92 = vmatpush1.bf16.msra.mxu0 0
    %93 = vmatprep.subr.bf16.mxu0 0
    %94 = vmatpush1.bf16.msra.mxu0 0
    %95 = vmatprep.subr.bf16.mxu0 0
    %96 = vmatpush1.bf16.msra.mxu0 %v75
    %97 = vmatprep.subr.bf16.mxu0 0
    %98 = vmatpush2.bf16.msra.mxu0 0
    %99 = vmatprep.subr.bf16.mxu0 0
    %100 = vmatpush2.bf16.msra.mxu0 0
    %101 = vmatprep.subr.bf16.mxu0 0
    %102 = vmatpush2.bf16.msra.mxu0 0
    %103 = vmatprep.subr.bf16.mxu0 0
    %104 = vmatpush2.bf16.msra.mxu0 0
    %105 = vmatprep.subr.bf16.mxu0 0
    %106 = vmatpush2.bf16.msra.mxu0 0
    %107 = vmatprep.subr.bf16.mxu0 0
    %108 = vmatpush2.bf16.msra.mxu0 0
    %109 = vmatprep.subr.bf16.mxu0 0
    %110 = vmatpush2.bf16.msra.mxu0 0
    %111 = vmatprep.subr.bf16.mxu0 0
    %112 = vmatpush2.bf16.msra.mxu0 0
    %113 = vmatprep.mubr.bf16.mxu0 0
    %114 = vmatmul.mubr.bf16.gmra.mxu0 %v79
    %v115 = vpop.f32.mrf.mxu0
    %v116 = vadd.f32 %v70, %v115
    %v117 = vpop.f32.mrf.mxu0
    %v118 = vpop.f32.mrf.mxu0
    %v119 = vadd.f32 %v70, %v118
    %v120 = vpop.f32.mrf.mxu0
    %121 = vdwg.mxu0
    %v122 = vmax.f32 %v116, 0.0
    %v123 = vmax.f32 %v119, 0.0
    %v124 = vpack.c.bf16 %v123, %v122
    %v125 = vld [vmem:[%s2 + $0x1] sm:$0x1]
    %v126 = vlaneseq
    %v127 = vshrl.u32 %v126, 7
    %v128 = vsub.s32 0, %v127
    %v129 = vrot.slane %v125, %v128
    %v146 = vunpack.c.l.b16 %v34
    %v147 = vunpack.c.l.b16 %v35
    %v148 = vunpack.c.l.b16 %v36
    %v149 = vunpack.c.l.b16 %v37
    %v150 = vunpack.c.l.b16 %v38
    %v151 = vunpack.c.l.b16 %v39
    %v152 = vunpack.c.l.b16 %v40
    %v153 = vunpack.c.l.b16 %v41
    %v154 = vunpack.c.l.b16 %v42
    %v155 = vunpack.c.l.b16 %v43
    %v156 = vunpack.c.l.b16 %v44
    %v157 = vunpack.c.l.b16 %v45
    %v158 = vunpack.c.l.b16 %v46
    %v159 = vunpack.c.l.b16 %v47
    %v160 = vunpack.c.l.b16 %v48
    %v161 = vunpack.c.l.b16 %v49
    %v162 = vpack.c.b16 %v147, %v146
    %v163 = vpack.c.b16 %v149, %v148
    %v164 = vpack.c.b16 %v151, %v150
    %v165 = vpack.c.b16 %v153, %v152
    %v166 = vpack.c.b16 %v155, %v154
    %v167 = vpack.c.b16 %v157, %v156
    %v168 = vpack.c.b16 %v159, %v158
    %v169 = vpack.c.b16 %v161, %v160
    %178 = vmatprep.subr.bf16.mxu0 0
    %179 = vmatpush1.bf16.msra.mxu0 %v169
    %180 = vmatprep.subr.bf16.mxu0 0
    %181 = vmatpush1.bf16.msra.mxu0 %v168
    %182 = vmatprep.subr.bf16.mxu0 0
    %183 = vmatpush1.bf16.msra.mxu0 %v167
    %184 = vmatprep.subr.bf16.mxu0 0
    %185 = vmatpush1.bf16.msra.mxu0 %v166
    %186 = vmatprep.subr.bf16.mxu0 0
    %187 = vmatpush1.bf16.msra.mxu0 %v165
    %188 = vmatprep.subr.bf16.mxu0 0
    %189 = vmatpush1.bf16.msra.mxu0 %v164
    %190 = vmatprep.subr.bf16.mxu0 0
    %191 = vmatpush1.bf16.msra.mxu0 %v163
    %192 = vmatprep.subr.bf16.mxu0 0
    %193 = vmatpush1.bf16.msra.mxu0 %v162
    %194 = vmatprep.subr.bf16.mxu0 0
    %195 = vmatpush2.bf16.msra.mxu0 0
    %196 = vmatprep.subr.bf16.mxu0 0
    %197 = vmatpush2.bf16.msra.mxu0 0
    %198 = vmatprep.subr.bf16.mxu0 0
    %199 = vmatpush2.bf16.msra.mxu0 0
    %200 = vmatprep.subr.bf16.mxu0 0
    %201 = vmatpush2.bf16.msra.mxu0 0
    %202 = vmatprep.subr.bf16.mxu0 0
    %203 = vmatpush2.bf16.msra.mxu0 0
    %204 = vmatprep.subr.bf16.mxu0 0
    %205 = vmatpush2.bf16.msra.mxu0 0
    %206 = vmatprep.subr.bf16.mxu0 0
    %207 = vmatpush2.bf16.msra.mxu0 0
    %208 = vmatprep.subr.bf16.mxu0 0
    %209 = vmatpush2.bf16.msra.mxu0 0
    %210 = vmatprep.mubr.bf16.mxu0 0
    %211 = vmatmul.mubr.bf16.gmra.mxu0 %v124
    %v212 = vpop.f32.mrf.mxu0
    %v213 = vadd.f32 %v129, %v212
    %v214 = vpop.f32.mrf.mxu0
    %v215 = vpop.f32.mrf.mxu0
    %v216 = vadd.f32 %v129, %v215
    %v217 = vpop.f32.mrf.mxu0
    %218 = vdwg.mxu0
    %v219 = vmax.f32 %v213, 0.0
    %v220 = vmax.f32 %v216, 0.0
    %v221 = vpack.c.bf16 %v220, %v219
    %v222 = vld [vmem:[%s2 + $0x2] sm:$0x1]
    %v223 = vlaneseq
    %v224 = vshrl.u32 %v223, 7
    %v225 = vsub.s32 0, %v224
    %v226 = vrot.slane %v222, %v225
    %v243 = vunpack.c.l.b16 %v50
    %v244 = vunpack.c.l.b16 %v51
    %v245 = vunpack.c.l.b16 %v52
    %v246 = vunpack.c.l.b16 %v53
    %v247 = vunpack.c.l.b16 %v54
    %v248 = vunpack.c.l.b16 %v55
    %v249 = vunpack.c.l.b16 %v56
    %v250 = vunpack.c.l.b16 %v57
    %v251 = vunpack.c.l.b16 %v58
    %v252 = vunpack.c.l.b16 %v59
    %v253 = vunpack.c.l.b16 %v60
    %v254 = vunpack.c.l.b16 %v61
    %v255 = vunpack.c.l.b16 %v62
    %v256 = vunpack.c.l.b16 %v63
    %v257 = vunpack.c.l.b16 %v64
    %v258 = vunpack.c.l.b16 %v65
    %v259 = vpack.c.b16 %v244, %v243
    %v260 = vpack.c.b16 %v246, %v245
    %v261 = vpack.c.b16 %v248, %v247
    %v262 = vpack.c.b16 %v250, %v249
    %v263 = vpack.c.b16 %v252, %v251
    %v264 = vpack.c.b16 %v254, %v253
    %v265 = vpack.c.b16 %v256, %v255
    %v266 = vpack.c.b16 %v258, %v257
    %275 = vmatprep.subr.bf16.mxu0 0
    %276 = vmatpush1.bf16.msra.mxu0 %v266
    %277 = vmatprep.subr.bf16.mxu0 0
    %278 = vmatpush1.bf16.msra.mxu0 %v265
    %279 = vmatprep.subr.bf16.mxu0 0
    %280 = vmatpush1.bf16.msra.mxu0 %v264
    %281 = vmatprep.subr.bf16.mxu0 0
    %282 = vmatpush1.bf16.msra.mxu0 %v263
    %283 = vmatprep.subr.bf16.mxu0 0
    %284 = vmatpush1.bf16.msra.mxu0 %v262
    %285 = vmatprep.subr.bf16.mxu0 0
    %286 = vmatpush1.bf16.msra.mxu0 %v261
    %287 = vmatprep.subr.bf16.mxu0 0
    %288 = vmatpush1.bf16.msra.mxu0 %v260
    %289 = vmatprep.subr.bf16.mxu0 0
    %290 = vmatpush1.bf16.msra.mxu0 %v259
    %291 = vmatprep.subr.bf16.mxu0 0
    %292 = vmatpush2.bf16.msra.mxu0 0
    %293 = vmatprep.subr.bf16.mxu0 0
    %294 = vmatpush2.bf16.msra.mxu0 0
    %295 = vmatprep.subr.bf16.mxu0 0
    %296 = vmatpush2.bf16.msra.mxu0 0
    %297 = vmatprep.subr.bf16.mxu0 0
    %298 = vmatpush2.bf16.msra.mxu0 0
    %299 = vmatprep.subr.bf16.mxu0 0
    %300 = vmatpush2.bf16.msra.mxu0 0
    %301 = vmatprep.subr.bf16.mxu0 0
    %302 = vmatpush2.bf16.msra.mxu0 0
    %303 = vmatprep.subr.bf16.mxu0 0
    %304 = vmatpush2.bf16.msra.mxu0 0
    %305 = vmatprep.subr.bf16.mxu0 0
    %306 = vmatpush2.bf16.msra.mxu0 0
    %307 = vmatprep.mubr.bf16.mxu0 0
    %308 = vmatmul.mubr.bf16.gmra.mxu0 %v221
    %v309 = vpop.f32.mrf.mxu0
    %v310 = vadd.f32 %v226, %v309
    %v311 = vpop.f32.mrf.mxu0
    %v312 = vpop.f32.mrf.mxu0
    %v313 = vadd.f32 %v226, %v312
    %v314 = vpop.f32.mrf.mxu0
    %315 = vdwg.mxu0
    %v316 = vpack.c.bf16 %v313, %v310
    %v318 = vunpack.c.l.b16 %v316
    %v319 = vunpack.c.h.b16 %v316
    %v320 = vpack.c.b16 %v318, %v318
    %v321 = vpack.c.b16 %v319, %v319
    %324 = vst [vmem:[%s3] sm:$0xf] %v320
    %325 = vst [vmem:[%s3 + $0x4] sm:$0xf] %v321
    // Predicated region
    $region18: #{_qnet_forward.1} parent=1 // pred_check
      _
    $region19: #{_qnet_forward.1} parent=1 // pred_check_branch
      %327 = sbr.rel (0) target = $region21
    $region20: #{_qnet_forward.1} parent=1 // pred_region
      _
    $region21: #{_qnet_forward.1} parent=1 // pred_fallthru
      _
    // Predicated region
    $region22: #{_qnet_forward.1} parent=1 // pred_check
      _
    $region23: #{_qnet_forward.1} parent=1 // pred_check_branch
      %329 = sbr.rel (0) target = $region25
    $region24: #{_qnet_forward.1} parent=1 // pred_region
      _
    $region25: #{_qnet_forward.1} parent=1 // pred_fallthru
      _
    %330 = vsyncpa [#allocation3], 1

</llo_original>
